<compile_context>
chip_gen: v7x
topology: tpu7x:2x2x1
jax: 0.10.0
libtpu: 0.0.40
codegen_flags: <defaults>
</compile_context>

<pallas_src>
import functools

import jax
import jax.numpy as jnp
from jax.experimental import pallas as pl
from jax.experimental.pallas import tpu as pltpu

INPUT_SIZE = 16
HIDDEN = 180           # LAYER_CENTRES[0] == LAYER_WIDTHS[1]
LATENT_CENTRES = 1     # LAYER_CENTRES[1]
OUT_SIZE = 2           # LAYER_WIDTHS[2]

TARGET_STEPS = 8       # aim for >= this many grid steps (pipelining + megacore)
MIN_TILE = 256         # preferred minimum batch tile once the batch is large


def _round_up(n, m):
    return ((n + m - 1) // m) * m


def _cdiv(a, b):
    return -(-a // b)


def _choose_tiling(B, batch_tile):
    """Pick (batch_tile bt, grid steps).  bt is a multiple of 8 sublanes and is
    capped at `batch_tile` (VMEM).  Once the batch is big enough we guarantee
    >= TARGET_STEPS and an even number of steps, so the BlockSpec pipeline can
    hide the x-in DMA / latent writeback and v7x's 2 TensorCores split evenly.
    Padding is then shaved back down by recomputing bt from the step count."""
    B8 = _round_up(max(B, 1), 8)
    cap = max(8, _round_up(batch_tile, 8))

    bt = _round_up(_cdiv(B8, TARGET_STEPS), 8)   # aim for TARGET_STEPS steps
    bt = min(max(bt, MIN_TILE), cap, B8)
    steps = _cdiv(B8, bt)
    if steps > 1 and steps % 2:
        steps += 1                               # even split for v7x megacore
    bt = min(_round_up(_cdiv(B8, steps), 8), cap)  # minimize pad rows
    steps = max(steps, _cdiv(B8, bt))
    return bt, steps


def _vmem_limit_bytes(bt, D):
    """Lane-padded, double-buffered working-set estimate + headroom, clamped to
    a range that is safe on v5e/v6e (128 MiB phys) and v7x (64 MiB phys)."""
    tile = lambda r, c: _round_up(r, 8) * _round_up(c, 128) * 4
    stream = 2 * (tile(bt, D) + tile(bt, HIDDEN) + tile(bt, OUT_SIZE))
    consts = 2 * (tile(D, HIDDEN) + tile(HIDDEN, HIDDEN) + 4 * tile(1, HIDDEN)
                  + tile(1, 1) + 2 * tile(1, OUT_SIZE))
    est = stream + consts
    return int(min(max(est + (4 << 20), 32 << 20), 56 << 20))


def rbfnn_kernel(x_ref, c0t_ref, c0sq_ref, g0_ref, w0t_ref, b0_ref,
                 c1_ref, g1_ref, w1_ref, b1_ref,
                 out_ref, latent_ref, *, matmul_dtype):
    x = x_ref[...]                                                 # (bt, D) f32

    # ---- RBF layer 0: expanded-form squared distance; cross term on the MXU.
    x2 = jnp.sum(x * x, axis=-1, keepdims=True)                    # (bt, 1)
    xc = jnp.dot(x.astype(matmul_dtype), c0t_ref[...].astype(matmul_dtype),
                 preferred_element_type=jnp.float32)               # (bt, 180)
    d2 = jnp.maximum(x2 + c0sq_ref[...] - 2.0 * xc, 0.0)
    # exp(-(sqrt(d2)/exp(ls))^2) == exp(-d2 * exp(-2*ls)); gamma precomputed.
    phi0 = jnp.exp(-d2 * g0_ref[...])                              # (bt, 180)

    # ---- Linear 0 (180 -> 180) on the MXU, f32 accumulate.
    h = jnp.dot(phi0.astype(matmul_dtype), w0t_ref[...].astype(matmul_dtype),
                preferred_element_type=jnp.float32) + b0_ref[...]  # (bt, 180)
    latent_ref[...] = h.astype(latent_ref.dtype)                   # latent_space

    # ---- RBF layer 1: single centre -> exact ||h - c1||^2 on VPU + lane reduce
    #      (an N=1 MXU matvec would be pure lane-padding waste).
    diff = h - c1_ref[...]                                         # (bt, 180)
    d2h = jnp.sum(diff * diff, axis=-1, keepdims=True)             # (bt, 1)
    phi1 = jnp.exp(-d2h * g1_ref[...])                             # (bt, 1)

    # ---- Linear 1 (1 -> 2): K=1 matmul == broadcast FMA on the VPU.
    out_ref[...] = phi1 * w1_ref[...] + b1_ref[...]                # (bt, 2)


def init_params(key, input_size=INPUT_SIZE):
    """Raw parameters mirroring the PyTorch module shapes / init."""
    k = jax.random.split(key, 6)
    c0 = jax.random.normal(k[0], (HIDDEN, input_size), jnp.float32)   # N(0,1)
    ls0 = jnp.zeros((HIDDEN,), jnp.float32)                           # const 0
    lim0 = 1.0 / jnp.sqrt(float(HIDDEN))
    w0 = jax.random.uniform(k[1], (HIDDEN, HIDDEN), jnp.float32, -lim0, lim0)
    b0 = jax.random.uniform(k[2], (HIDDEN,), jnp.float32, -lim0, lim0)
    c1 = jax.random.normal(k[3], (LATENT_CENTRES, HIDDEN), jnp.float32)
    ls1 = jnp.zeros((LATENT_CENTRES,), jnp.float32)
    lim1 = 1.0 / jnp.sqrt(float(LATENT_CENTRES))
    w1 = jax.random.uniform(k[4], (OUT_SIZE, LATENT_CENTRES), jnp.float32,
                            -lim1, lim1)
    b1 = jax.random.uniform(k[5], (OUT_SIZE,), jnp.float32, -lim1, lim1)
    return {"c0": c0, "ls0": ls0, "w0": w0, "b0": b0,
            "c1": c1, "ls1": ls1, "w1": w1, "b1": b1}


def prepare_kernel_params(p):
    """Precompute the parameter constants the kernel consumes (host/XLA side)."""
    return {
        "c0t": p["c0"].T,                                          # (D, 180)
        "c0sq": jnp.sum(p["c0"] * p["c0"], axis=1)[None, :],       # (1, 180)
        "g0": jnp.exp(-2.0 * p["ls0"])[None, :],                   # (1, 180)
        "w0t": p["w0"].T,                                          # (180, 180)
        "b0": p["b0"][None, :],                                    # (1, 180)
        "c1": p["c1"],                                             # (1, 180)
        "g1": jnp.exp(-2.0 * p["ls1"])[None, :],                   # (1, 1)
        "w1": p["w1"].T,                                           # (1, 2)
        "b1": p["b1"][None, :],                                    # (1, 2)
    }


@functools.partial(
    jax.jit, static_argnames=("batch_tile", "latent_dtype", "matmul_dtype"))
def rbfnn_forward(x, kp, batch_tile=4096, latent_dtype=jnp.float32,
                  matmul_dtype=jnp.float32):
    """x: (B, ...) -> (out (B,2), latent (B,180)); flattens like inputs.view(B,-1).

    latent_dtype=jnp.bfloat16 halves the dominant HBM writeback and
    matmul_dtype=jnp.bfloat16 speeds the MXU work (f32 accumulation kept);
    both relax accuracy below the 1e-4 f32 reference check, so defaults are f32.
    """
    x_flat = x.reshape(x.shape[0], -1).astype(jnp.float32)
    B, D = x_flat.shape

    bt, steps = _choose_tiling(B, batch_tile)
    B_pad = bt * steps
    if B_pad != B:
        x_flat = jnp.pad(x_flat, ((0, B_pad - B), (0, 0)))

    def const(shape):
        return pl.BlockSpec(shape, lambda i: (0, 0))

    cost = pl.CostEstimate(
        flops=2 * B_pad * (D * HIDDEN + HIDDEN * HIDDEN) + 8 * B_pad * HIDDEN,
        transcendentals=B_pad * (HIDDEN + 1),
        bytes_accessed=(4 * B_pad * (D + OUT_SIZE)
                        + B_pad * HIDDEN * jnp.dtype(latent_dtype).itemsize
                        + 4 * (D * HIDDEN + HIDDEN * HIDDEN + 6 * HIDDEN)),
    )

    out, latent = pl.pallas_call(
        functools.partial(rbfnn_kernel, matmul_dtype=matmul_dtype),
        out_shape=(jax.ShapeDtypeStruct((B_pad, OUT_SIZE), jnp.float32),
                   jax.ShapeDtypeStruct((B_pad, HIDDEN), latent_dtype)),
        grid=(steps,),
        in_specs=[
            pl.BlockSpec((bt, D), lambda i: (i, 0)),      # x (batch-tiled)
            const((D, HIDDEN)),                           # c0t
            const((1, HIDDEN)),                           # sum(c0^2)
            const((1, HIDDEN)),                           # gamma0
            const((HIDDEN, HIDDEN)),                      # w0t
            const((1, HIDDEN)),                           # b0
            const((1, HIDDEN)),                           # c1
            const((1, 1)),                                # gamma1
            const((1, OUT_SIZE)),                         # w1 row
            const((1, OUT_SIZE)),                         # b1
        ],
        # NOTE: (bt, 2) out store intentionally NOT padded to 128 lanes (would
        # add ~70% HBM writeback to a memory-bound kernel).
        out_specs=(pl.BlockSpec((bt, OUT_SIZE), lambda i: (i, 0)),
                   pl.BlockSpec((bt, HIDDEN), lambda i: (i, 0))),
        compiler_params=pltpu.CompilerParams(
            dimension_semantics=("parallel",),
            vmem_limit_bytes=_vmem_limit_bytes(bt, D)),
        cost_estimate=cost,
    )(x_flat, kp["c0t"], kp["c0sq"], kp["g0"], kp["w0t"], kp["b0"],
      kp["c1"], kp["g1"], kp["w1"], kp["b1"])

    return out[:B], latent[:B]


def rbfnn_reference(x, p):
    """Pure-JAX reference matching the PyTorch forward (exact (x-c) distances)."""
    xf = x.reshape(x.shape[0], -1).astype(jnp.float32)

    def rbf(z, centres, log_sigmas):
        d = jnp.sqrt(jnp.sum((z[:, None, :] - centres[None, :, :]) ** 2, -1))
        alpha = d / jnp.exp(log_sigmas)[None, :]
        return jnp.exp(-alpha * alpha)

    h = rbf(xf, p["c0"], p["ls0"]) @ p["w0"].T + p["b0"]
    out = rbf(h, p["c1"], p["ls1"]) @ p["w1"].T + p["b1"]
    return out, h


if __name__ == "__main__":
    key = jax.random.PRNGKey(0)
    k_x, k_p = jax.random.split(key)
    raw = init_params(k_p)
    kp = prepare_kernel_params(raw)

    # Small input consistent with `inputs.view(B, -1)` -> (B, 16) features.
    x_small = jax.random.normal(k_x, (2, 4, 4), jnp.float32)   # batch=2, 4x4 -> 16
    out, latent = jax.block_until_ready(rbfnn_forward(x_small, kp))
    ref_out, ref_latent = rbfnn_reference(x_small, raw)
    assert out.shape == (2, OUT_SIZE) and latent.shape == (2, HIDDEN)
    assert jnp.allclose(latent, ref_latent, atol=1e-4, rtol=1e-4), (
        float(jnp.max(jnp.abs(latent - ref_latent))))
    assert jnp.allclose(out, ref_out, atol=1e-4, rtol=1e-4), (
        float(jnp.max(jnp.abs(out - ref_out))))

    # Also exercise the multi-step (pipelined / padded / even) grid path.
    x_big = jax.random.normal(jax.random.PRNGKey(1), (300, INPUT_SIZE), jnp.float32)
    out_b, lat_b = jax.block_until_ready(rbfnn_forward(x_big, kp))
    ref_out_b, ref_lat_b = rbfnn_reference(x_big, raw)
    assert out_b.shape == (300, OUT_SIZE) and lat_b.shape == (300, HIDDEN)
    assert jnp.allclose(lat_b, ref_lat_b, atol=1e-4, rtol=1e-4), (
        float(jnp.max(jnp.abs(lat_b - ref_lat_b))))
    assert jnp.allclose(out_b, ref_out_b, atol=1e-4, rtol=1e-4), (
        float(jnp.max(jnp.abs(out_b - ref_out_b))))

    print("KERNEL_OK")
</pallas_src>

<mosaic_0001>
module attributes {stable_mosaic.version = 11 : i64} {
  func.func @rbfnn_kernel(%arg0: i32, %arg1: memref<8x16xf32, #tpu.memory_space<vmem>>, %arg2: memref<16x180xf32, #tpu.memory_space<vmem>>, %arg3: memref<1x180xf32, #tpu.memory_space<vmem>>, %arg4: memref<1x180xf32, #tpu.memory_space<vmem>>, %arg5: memref<180x180xf32, #tpu.memory_space<vmem>>, %arg6: memref<1x180xf32, #tpu.memory_space<vmem>>, %arg7: memref<1x180xf32, #tpu.memory_space<vmem>>, %arg8: memref<1x1xf32, #tpu.memory_space<vmem>>, %arg9: memref<1x2xf32, #tpu.memory_space<vmem>>, %arg10: memref<1x2xf32, #tpu.memory_space<vmem>>, %arg11: memref<8x2xf32, #tpu.memory_space<vmem>>, %arg12: memref<8x180xf32, #tpu.memory_space<vmem>>) attributes {dimension_semantics = [#tpu.dimension_semantics<parallel>], iteration_bounds = array<i64: 1>, scalar_prefetch = 0 : i64, scratch_operands = 0 : i64, tpu.core_type = #tpu.core_type<tc>, window_params = [{transform_indices = @transform_0, window_bounds = array<i64: 8, 16>}, {pipeline_mode = #tpu.pipeline_mode<synchronous>, transform_indices = @transform_1, window_bounds = array<i64: 16, 180>}, {pipeline_mode = #tpu.pipeline_mode<synchronous>, transform_indices = @transform_2, window_bounds = array<i64: 1, 180>}, {pipeline_mode = #tpu.pipeline_mode<synchronous>, transform_indices = @transform_3, window_bounds = array<i64: 1, 180>}, {pipeline_mode = #tpu.pipeline_mode<synchronous>, transform_indices = @transform_4, window_bounds = array<i64: 180, 180>}, {pipeline_mode = #tpu.pipeline_mode<synchronous>, transform_indices = @transform_5, window_bounds = array<i64: 1, 180>}, {pipeline_mode = #tpu.pipeline_mode<synchronous>, transform_indices = @transform_6, window_bounds = array<i64: 1, 180>}, {pipeline_mode = #tpu.pipeline_mode<synchronous>, transform_indices = @transform_7, window_bounds = array<i64: 1, 1>}, {pipeline_mode = #tpu.pipeline_mode<synchronous>, transform_indices = @transform_8, window_bounds = array<i64: 1, 2>}, {pipeline_mode = #tpu.pipeline_mode<synchronous>, transform_indices = @transform_9, window_bounds = array<i64: 1, 2>}, {transform_indices = @transform_10, window_bounds = array<i64: 8, 2>}, {transform_indices = @transform_11, window_bounds = array<i64: 8, 180>}]} {
    %c0 = arith.constant 0 : index
    %c0_0 = arith.constant 0 : index
    %0 = vector.load %arg1[%c0, %c0_0] : memref<8x16xf32, #tpu.memory_space<vmem>>, vector<8x16xf32>
    %1 = arith.mulf %0, %0 : vector<8x16xf32>
    %cst = arith.constant dense<0.000000e+00> : vector<8xf32>
    %2 = vector.multi_reduction <add>, %1, %cst [1] : vector<8x16xf32> to vector<8xf32>
    %3 = vector.shape_cast %2 : vector<8xf32> to vector<8x1xf32>
    %c0_1 = arith.constant 0 : index
    %c0_2 = arith.constant 0 : index
    %4 = vector.load %arg2[%c0_1, %c0_2] : memref<16x180xf32, #tpu.memory_space<vmem>>, vector<16x180xf32>
    %cst_3 = arith.constant dense<0.000000e+00> : vector<8x180xf32>
    %5 = tpu.matmul %0, %4, %cst_3 {dimension_numbers = #tpu.dot_dimension_numbers<[1], [0], [0], [1], [0, 0, 1, 1], [], []>} : vector<8x16xf32>, vector<16x180xf32>, vector<8x180xf32> -> vector<8x180xf32>
    %c0_4 = arith.constant 0 : index
    %c0_5 = arith.constant 0 : index
    %6 = vector.load %arg3[%c0_4, %c0_5] : memref<1x180xf32, #tpu.memory_space<vmem>>, vector<1x180xf32>
    %7 = vector.broadcast %3 : vector<8x1xf32> to vector<8x180xf32>
    %8 = vector.broadcast %6 : vector<1x180xf32> to vector<8x180xf32>
    %9 = arith.addf %7, %8 : vector<8x180xf32>
    %cst_6 = arith.constant 2.000000e+00 : f32
    %10 = vector.broadcast %cst_6 : f32 to vector<8x180xf32>
    %11 = arith.mulf %10, %5 : vector<8x180xf32>
    %12 = arith.subf %9, %11 : vector<8x180xf32>
    %cst_7 = arith.constant 0.000000e+00 : f32
    %13 = vector.broadcast %cst_7 : f32 to vector<8x180xf32>
    %14 = arith.maximumf %12, %13 : vector<8x180xf32>
    %cst_8 = arith.constant 0.000000e+00 : f32
    %15 = vector.broadcast %cst_8 : f32 to vector<8x180xf32>
    %16 = arith.subf %15, %14 : vector<8x180xf32>
    %c0_9 = arith.constant 0 : index
    %c0_10 = arith.constant 0 : index
    %17 = vector.load %arg4[%c0_9, %c0_10] : memref<1x180xf32, #tpu.memory_space<vmem>>, vector<1x180xf32>
    %18 = vector.broadcast %17 : vector<1x180xf32> to vector<8x180xf32>
    %19 = arith.mulf %16, %18 : vector<8x180xf32>
    %20 = math.exp %19 : vector<8x180xf32>
    %c0_11 = arith.constant 0 : index
    %c0_12 = arith.constant 0 : index
    %21 = vector.load %arg5[%c0_11, %c0_12] : memref<180x180xf32, #tpu.memory_space<vmem>>, vector<180x180xf32>
    %cst_13 = arith.constant dense<0.000000e+00> : vector<8x180xf32>
    %22 = tpu.matmul %20, %21, %cst_13 {dimension_numbers = #tpu.dot_dimension_numbers<[1], [0], [0], [1], [0, 0, 1, 1], [], []>} : vector<8x180xf32>, vector<180x180xf32>, vector<8x180xf32> -> vector<8x180xf32>
    %c0_14 = arith.constant 0 : index
    %c0_15 = arith.constant 0 : index
    %23 = vector.load %arg6[%c0_14, %c0_15] : memref<1x180xf32, #tpu.memory_space<vmem>>, vector<1x180xf32>
    %24 = vector.broadcast %23 : vector<1x180xf32> to vector<8x180xf32>
    %25 = arith.addf %22, %24 : vector<8x180xf32>
    %c0_16 = arith.constant 0 : index
    %c0_17 = arith.constant 0 : index
    %26 = vector.load %arg12[%c0_16, %c0_17] : memref<8x180xf32, #tpu.memory_space<vmem>>, vector<8x180xf32>
    tpu.vector_store %arg12[%c0_16, %c0_17], %25 {strides = array<i32>} : memref<8x180xf32, #tpu.memory_space<vmem>>, vector<8x180xf32>,
    %c0_18 = arith.constant 0 : index
    %c0_19 = arith.constant 0 : index
    %27 = vector.load %arg7[%c0_18, %c0_19] : memref<1x180xf32, #tpu.memory_space<vmem>>, vector<1x180xf32>
    %28 = vector.broadcast %27 : vector<1x180xf32> to vector<8x180xf32>
    %29 = arith.subf %25, %28 : vector<8x180xf32>
    %30 = arith.mulf %29, %29 : vector<8x180xf32>
    %cst_20 = arith.constant dense<0.000000e+00> : vector<8xf32>
    %31 = vector.multi_reduction <add>, %30, %cst_20 [1] : vector<8x180xf32> to vector<8xf32>
    %32 = vector.shape_cast %31 : vector<8xf32> to vector<8x1xf32>
    %cst_21 = arith.constant 0.000000e+00 : f32
    %33 = vector.broadcast %cst_21 : f32 to vector<8x1xf32>
    %34 = arith.subf %33, %32 : vector<8x1xf32>
    %c0_22 = arith.constant 0 : index
    %c0_23 = arith.constant 0 : index
    %35 = vector.load %arg8[%c0_22, %c0_23] : memref<1x1xf32, #tpu.memory_space<vmem>>, vector<1x1xf32>
    %36 = vector.broadcast %35 : vector<1x1xf32> to vector<8x1xf32>
    %37 = arith.mulf %34, %36 : vector<8x1xf32>
    %38 = math.exp %37 : vector<8x1xf32>
    %c0_24 = arith.constant 0 : index
    %c0_25 = arith.constant 0 : index
    %39 = vector.load %arg9[%c0_24, %c0_25] : memref<1x2xf32, #tpu.memory_space<vmem>>, vector<1x2xf32>
    %40 = vector.broadcast %38 : vector<8x1xf32> to vector<8x2xf32>
    %41 = vector.broadcast %39 : vector<1x2xf32> to vector<8x2xf32>
    %42 = arith.mulf %40, %41 : vector<8x2xf32>
    %c0_26 = arith.constant 0 : index
    %c0_27 = arith.constant 0 : index
    %43 = vector.load %arg10[%c0_26, %c0_27] : memref<1x2xf32, #tpu.memory_space<vmem>>, vector<1x2xf32>
    %44 = vector.broadcast %43 : vector<1x2xf32> to vector<8x2xf32>
    %45 = arith.addf %42, %44 : vector<8x2xf32>
    %c0_28 = arith.constant 0 : index
    %c0_29 = arith.constant 0 : index
    %46 = vector.load %arg11[%c0_28, %c0_29] : memref<8x2xf32, #tpu.memory_space<vmem>>, vector<8x2xf32>
    tpu.vector_store %arg11[%c0_28, %c0_29], %45 {strides = array<i32>} : memref<8x2xf32, #tpu.memory_space<vmem>>, vector<8x2xf32>,
    return
  }
  func.func @transform_0(%arg0: i32) -> (i32, i32) {
    %c0_i32 = arith.constant 0 : i32
    %c0_i32_0 = arith.constant 0 : i32
    return %arg0, %c0_i32 : i32, i32
  }
  func.func @transform_1(%arg0: i32) -> (i32, i32) {
    %c0_i32 = arith.constant 0 : i32
    %c0_i32_0 = arith.constant 0 : i32
    %c0_i32_1 = arith.constant 0 : i32
    return %c0_i32, %c0_i32_0 : i32, i32
  }
  func.func @transform_2(%arg0: i32) -> (i32, i32) {
    %c0_i32 = arith.constant 0 : i32
    %c0_i32_0 = arith.constant 0 : i32
    %c0_i32_1 = arith.constant 0 : i32
    return %c0_i32, %c0_i32_0 : i32, i32
  }
  func.func @transform_3(%arg0: i32) -> (i32, i32) {
    %c0_i32 = arith.constant 0 : i32
    %c0_i32_0 = arith.constant 0 : i32
    %c0_i32_1 = arith.constant 0 : i32
    return %c0_i32, %c0_i32_0 : i32, i32
  }
  func.func @transform_4(%arg0: i32) -> (i32, i32) {
    %c0_i32 = arith.constant 0 : i32
    %c0_i32_0 = arith.constant 0 : i32
    %c0_i32_1 = arith.constant 0 : i32
    return %c0_i32, %c0_i32_0 : i32, i32
  }
  func.func @transform_5(%arg0: i32) -> (i32, i32) {
    %c0_i32 = arith.constant 0 : i32
    %c0_i32_0 = arith.constant 0 : i32
    %c0_i32_1 = arith.constant 0 : i32
    return %c0_i32, %c0_i32_0 : i32, i32
  }
  func.func @transform_6(%arg0: i32) -> (i32, i32) {
    %c0_i32 = arith.constant 0 : i32
    %c0_i32_0 = arith.constant 0 : i32
    %c0_i32_1 = arith.constant 0 : i32
    return %c0_i32, %c0_i32_0 : i32, i32
  }
  func.func @transform_7(%arg0: i32) -> (i32, i32) {
    %c0_i32 = arith.constant 0 : i32
    %c0_i32_0 = arith.constant 0 : i32
    %c0_i32_1 = arith.constant 0 : i32
    return %c0_i32, %c0_i32_0 : i32, i32
  }
  func.func @transform_8(%arg0: i32) -> (i32, i32) {
    %c0_i32 = arith.constant 0 : i32
    %c0_i32_0 = arith.constant 0 : i32
    %c0_i32_1 = arith.constant 0 : i32
    return %c0_i32, %c0_i32_0 : i32, i32
  }
  func.func @transform_9(%arg0: i32) -> (i32, i32) {
    %c0_i32 = arith.constant 0 : i32
    %c0_i32_0 = arith.constant 0 : i32
    %c0_i32_1 = arith.constant 0 : i32
    return %c0_i32, %c0_i32_0 : i32, i32
  }
  func.func @transform_10(%arg0: i32) -> (i32, i32) {
    %c0_i32 = arith.constant 0 : i32
    %c0_i32_0 = arith.constant 0 : i32
    return %arg0, %c0_i32 : i32, i32
  }
  func.func @transform_11(%arg0: i32) -> (i32, i32) {
    %c0_i32 = arith.constant 0 : i32
    %c0_i32_0 = arith.constant 0 : i32
    return %arg0, %c0_i32 : i32, i32
  }
}

</mosaic_0001>

<llo_original>
// kernel: rbfnn_forward.1
$region0: #{rbfnn_forward.1}
  #allocation0 [shape = 'u32[]', space=smem, size = 0x4, offset = 0x4, fixed_abs, tag = 'smem constant byte address 0x4 - core index']
  #allocation1 [shape = 'u32[144,128]{1,0:T(1,128)}', space=vmem, size = 0x12000, scoped, tag = 'internal scratch']
  #allocation2 [shape = 'f32[1,1]{1,0:T(1,128)S(1)}', space=vmem, size = 0x200, scoped, tag = 'scoped memory for rbfnn_forward.1']
  %s0 = inlined_call_operand.vmem [shape: f32[8,16], index: 0, kind: input, shape index: {}]
  %s1 = inlined_call_operand.vmem [shape: f32[16,180], index: 1, kind: input, shape index: {}]
  %s2 = inlined_call_operand.vmem [shape: f32[1,180], index: 2, kind: input, shape index: {}]
  %s3 = inlined_call_operand.vmem [shape: f32[1,180], index: 3, kind: input, shape index: {}]
  %s4 = inlined_call_operand.hbm [shape: f32[180,180], index: 4, kind: input, shape index: {}]
  %s5 = inlined_call_operand.vmem [shape: f32[1,180], index: 5, kind: input, shape index: {}]
  %s6 = inlined_call_operand.vmem [shape: f32[1,180], index: 6, kind: input, shape index: {}]
  %s7 = inlined_call_operand.<no memory space> [shape: f32[1,1], index: 7, kind: input, shape index: {}]
  %s8 = inlined_call_operand.vmem [shape: f32[1,2], index: 8, kind: input, shape index: {}]
  %s9 = inlined_call_operand.hbm [shape: f32[1,2], index: 9, kind: input, shape index: {}]
  %s10 = inlined_call_operand.vmem [shape: f32[8,2], index: 10, kind: output, shape index: {0}]
  %s11 = inlined_call_operand.vmem [shape: f32[8,180], index: 11, kind: output, shape index: {1}]
  %12 = xla_tuple %s10, %s11
  %s13 = sld [smem:[#allocation0]]
  $region66: #{rbfnn_forward.1} parent=0
    _
  %s15 = ssub.s32 1, %s13
  %s16 = scalar_select 0, %s15, %s13
  %v17 = vstv %s7
  %18 = vst [vmem:[#allocation2] sm:$0x1] %v17
  $region1: #{rbfnn_forward.1} parent=0
    #allocation3 [shape = 'u8[188416]{0}', space=vmem, size = 0x2e000, scoped, tag = 'input window, operand 4, single buffered']
    #allocation4 [shape = 's32[1]{0}', space=sflag, size = 0x4, scoped, tag = 'scoped memory for rbfnn_forward.1']
    #allocation5 [shape = 'u8[512]{0}', space=vmem, size = 0x400, scoped, tag = 'input window, operand 9, single buffered']
    #allocation6 [shape = 's32[1]{0}', space=sflag, size = 0x4, scoped, tag = 'scoped memory for rbfnn_forward.1']
    %19 = vsyncpa [#allocation4], 0
    %20 = vsyncpa [#allocation6], 0
    // Predicated region
    $region2: #{rbfnn_forward.1} parent=1 // pred_check
      _
    $region3: #{rbfnn_forward.1} parent=1 // pred_check_branch
      %22 = sbr.rel (0) target = $region5
    $region4: #{rbfnn_forward.1} parent=1 // pred_region
      _
    $region5: #{rbfnn_forward.1} parent=1 // pred_fallthru
      _
    // Predicated region
    $region6: #{rbfnn_forward.1} parent=1 // pred_check
      _
    $region7: #{rbfnn_forward.1} parent=1 // pred_check_branch
      %24 = sbr.rel (0) target = $region9
    $region8: #{rbfnn_forward.1} parent=1 // pred_region
      _
    $region9: #{rbfnn_forward.1} parent=1 // pred_fallthru
      _
    // Predicated region
    $region10: #{rbfnn_forward.1} parent=1 // pred_check
      _
    $region11: #{rbfnn_forward.1} parent=1 // pred_check_branch
      %26 = sbr.rel (0) target = $region13
    $region12: #{rbfnn_forward.1} parent=1 // pred_region
      _
    $region13: #{rbfnn_forward.1} parent=1 // pred_fallthru
      _
    // Predicated region
    $region14: #{rbfnn_forward.1} parent=1 // pred_check
      _
    $region15: #{rbfnn_forward.1} parent=1 // pred_check_branch
      %28 = sbr.rel (0) target = $region17
    $region16: #{rbfnn_forward.1} parent=1 // pred_region
      _
    $region17: #{rbfnn_forward.1} parent=1 // pred_fallthru
      _
    // Predicated region
    $region18: #{rbfnn_forward.1} parent=1 // pred_check
      _
    $region19: #{rbfnn_forward.1} parent=1 // pred_check_branch
      %30 = sbr.rel (0) target = $region21
    $region20: #{rbfnn_forward.1} parent=1 // pred_region
      %s32 = ssub.s32 5888, 5888
      %33 = vsyncadd [#allocation4], %s32
      %s34 = sshll.u32 [#allocation3], 4
      %s35 = int_to_ptr.vmem [resolvable:$true] %s34
      %40 = dma.hbm_to_vmem [thread:$0]  %s4, 5888, %s35, [#allocation4], 256, 256, 16
    $region21: #{rbfnn_forward.1} parent=1 // pred_fallthru
      _
    // Predicated region
    $region22: #{rbfnn_forward.1} parent=1 // pred_check
      _
    $region23: #{rbfnn_forward.1} parent=1 // pred_check_branch
      %42 = sbr.rel (0) target = $region25
    $region24: #{rbfnn_forward.1} parent=1 // pred_region
      _
    $region25: #{rbfnn_forward.1} parent=1 // pred_fallthru
      _
    // Predicated region
    $region26: #{rbfnn_forward.1} parent=1 // pred_check
      _
    $region27: #{rbfnn_forward.1} parent=1 // pred_check_branch
      %44 = sbr.rel (0) target = $region29
    $region28: #{rbfnn_forward.1} parent=1 // pred_region
      _
    $region29: #{rbfnn_forward.1} parent=1 // pred_fallthru
      _
    // Predicated region
    $region30: #{rbfnn_forward.1} parent=1 // pred_check
      _
    $region31: #{rbfnn_forward.1} parent=1 // pred_check_branch
      %46 = sbr.rel (0) target = $region33
    $region32: #{rbfnn_forward.1} parent=1 // pred_region
      _
    $region33: #{rbfnn_forward.1} parent=1 // pred_fallthru
      _
    // Predicated region
    $region34: #{rbfnn_forward.1} parent=1 // pred_check
      _
    $region35: #{rbfnn_forward.1} parent=1 // pred_check_branch
      %48 = sbr.rel (0) target = $region37
    $region36: #{rbfnn_forward.1} parent=1 // pred_region
      _
    $region37: #{rbfnn_forward.1} parent=1 // pred_fallthru
      _
    // Predicated region
    $region38: #{rbfnn_forward.1} parent=1 // pred_check
      _
    $region39: #{rbfnn_forward.1} parent=1 // pred_check_branch
      %50 = sbr.rel (0) target = $region41
    $region40: #{rbfnn_forward.1} parent=1 // pred_region
      %s52 = ssub.s32 16, 16
      %53 = vsyncadd [#allocation6], %s52
      %s55 = sshll.u32 [#allocation5], 4
      %s56 = int_to_ptr.vmem [resolvable:$true] %s55
      %58 = dma.hbm_to_vmem [thread:$0]  %s9, 16, %s56, [#allocation6]
    $region41: #{rbfnn_forward.1} parent=1 // pred_fallthru
      _
    // Predicated region
    $region42: #{rbfnn_forward.1} parent=1 // pred_check
      _
    $region43: #{rbfnn_forward.1} parent=1 // pred_check_branch
      %60 = sbr.rel (0) target = $region45
    $region44: #{rbfnn_forward.1} parent=1 // pred_region
      %61 = dma.done [#allocation4], 5888
    $region45: #{rbfnn_forward.1} parent=1 // pred_fallthru
      _
    // Predicated region
    $region46: #{rbfnn_forward.1} parent=1 // pred_check
      _
    $region47: #{rbfnn_forward.1} parent=1 // pred_check_branch
      %63 = sbr.rel (0) target = $region49
    $region48: #{rbfnn_forward.1} parent=1 // pred_region
      %64 = dma.done [#allocation6], 16
    $region49: #{rbfnn_forward.1} parent=1 // pred_fallthru
      _
    %v65 = vld [vmem:[%s0] sm:$0xff]
    %v66 = vmul.f32 %v65, %v65
    %vm67 = vcmask 130048
    %v68 = vsel %vm67, %v66, 0.0
    %69 = vadd.xlane.f32.xlu0 %v68
    %v70 = vpop.xlane.xlu0 %69
    %v71 = vld [vmem:[%s1] sm:$0xff]
    %v72 = vld [vmem:[%s1 + $0x8] sm:$0xff]
    %v73 = vld [vmem:[%s1 + $0x10] sm:$0xff]
    %v74 = vld [vmem:[%s1 + $0x18] sm:$0xff]
    %v76 = vsel %vm67, %v65, 0
    %78 = vmatprep.subr.mxu0 %v72
    %79 = vmatpush1.msra.mxu0 %v71
    %80 = vmatprep.subr.mxu0 %v74
    %81 = vmatpush1.msra.mxu0 %v73
    %82 = vmatprep.subr.mxu0 0.0
    %83 = vmatpush1.msra.mxu0 0.0
    %84 = vmatprep.subr.mxu0 0.0
    %85 = vmatpush1.msra.mxu0 0.0
    %86 = vmatprep.subr.mxu0 0.0
    %87 = vmatpush1.msra.mxu0 0.0
    %88 = vmatprep.subr.mxu0 0.0
    %89 = vmatpush1.msra.mxu0 0.0
    %90 = vmatprep.subr.mxu0 0.0
    %91 = vmatpush1.msra.mxu0 0.0
    %92 = vmatprep.subr.mxu0 0.0
    %93 = vmatpush1.msra.mxu0 0.0
    %94 = vmatprep.subr.mxu0 0.0
    %95 = vmatpush1.msra.mxu0 0.0
    %96 = vmatprep.subr.mxu0 0.0
    %97 = vmatpush1.msra.mxu0 0.0
    %98 = vmatprep.subr.mxu0 0.0
    %99 = vmatpush1.msra.mxu0 0.0
    %100 = vmatprep.subr.mxu0 0.0
    %101 = vmatpush1.msra.mxu0 0.0
    %102 = vmatprep.subr.mxu0 0.0
    %103 = vmatpush1.msra.mxu0 0.0
    %104 = vmatprep.subr.mxu0 0.0
    %105 = vmatpush1.msra.mxu0 0.0
    %106 = vmatprep.subr.mxu0 0.0
    %107 = vmatpush1.msra.mxu0 0.0
    %108 = vmatprep.subr.mxu0 0.0
    %109 = vmatpush1.msra.mxu0 0.0
    %110 = vmatprep.subr.mxu0 0.0
    %111 = vmatpush1.msra.mxu0 0.0
    %112 = vmatprep.subr.mxu0 0.0
    %113 = vmatpush1.msra.mxu0 0.0
    %114 = vmatprep.subr.mxu0 0.0
    %115 = vmatpush1.msra.mxu0 0.0
    %116 = vmatprep.subr.mxu0 0.0
    %117 = vmatpush1.msra.mxu0 0.0
    %118 = vmatprep.subr.mxu0 0.0
    %119 = vmatpush1.msra.mxu0 0.0
    %120 = vmatprep.subr.mxu0 0.0
    %121 = vmatpush1.msra.mxu0 0.0
    %122 = vmatprep.subr.mxu0 0.0
    %123 = vmatpush1.msra.mxu0 0.0
    %124 = vmatprep.subr.mxu0 0.0
    %125 = vmatpush1.msra.mxu0 0.0
    %126 = vmatprep.subr.mxu0 0.0
    %127 = vmatpush1.msra.mxu0 0.0
    %128 = vmatprep.subr.mxu0 0.0
    %129 = vmatpush1.msra.mxu0 0.0
    %130 = vmatprep.subr.mxu0 0.0
    %131 = vmatpush1.msra.mxu0 0.0
    %132 = vmatprep.subr.mxu0 0.0
    %133 = vmatpush1.msra.mxu0 0.0
    %134 = vmatprep.subr.mxu0 0.0
    %135 = vmatpush1.msra.mxu0 0.0
    %136 = vmatprep.subr.mxu0 0.0
    %137 = vmatpush1.msra.mxu0 0.0
    %138 = vmatprep.subr.mxu0 0.0
    %139 = vmatpush1.msra.mxu0 0.0
    %140 = vmatprep.subr.mxu0 0.0
    %141 = vmatpush1.msra.mxu0 0.0
    %142 = vmatprep.mubr.f32.mxu0 0.0
    %143 = vmatmul.mubr.f32.gmra.mrb[0].mxu0 %v76
    %v144 = vpop.f32.mrb[0].mxu0
    %v145 = vadd.f32 0.0, %v144
    %v146 = vpop.f32.mrb[0].mxu0
    %v147 = vadd.f32 0.0, %v146
    %148 = vdwg.mxu0
    %v149 = vld [vmem:[%s2] sm:$0x3]
    %v151 = vlaneseq
    %v152 = vshrl.u32 %v151, 7
    %v153 = vsub.s32 0, %v152
    %v154 = vrot.slane %v149, %v153
    %v155 = vlaneseq
    %v156 = vshrl.u32 %v155, 7
    %v157 = vsub.s32 1, %v156
    %v158 = vrot.slane %v149, %v157
    %v161 = vadd.f32 %v70, %v154
    %v162 = vadd.f32 %v70, %v158
    %v163 = vmul.f32 %v145, 2.0
    %v164 = vmul.f32 %v147, 2.0
    %v165 = vsub.f32 %v161, %v163
    %v166 = vsub.f32 %v162, %v164
    %v167 = vmax.f32 %v165, 0.0
    %v168 = vmax.f32 %v166, 0.0
    %v169 = vsub.f32 0.0, %v167
    %v170 = vsub.f32 0.0, %v168
    %v171 = vld [vmem:[%s3] sm:$0x3]
    %v173 = vlaneseq
    %v174 = vshrl.u32 %v173, 7
    %v175 = vsub.s32 0, %v174
    %v176 = vrot.slane %v171, %v175
    %v177 = vlaneseq
    %v178 = vshrl.u32 %v177, 7
    %v179 = vsub.s32 1, %v178
    %v180 = vrot.slane %v171, %v179
    %v183 = vmul.f32 %v169, %v176
    %v184 = vmul.f32 %v170, %v180
    %v185 = vmul.f32 %v183, 1.442695
    %v186 = vpow.pop %v185
    %v187 = vmul.f32 %v184, 1.442695
    %v188 = vpow.pop %v187
    %v189 = vld [vmem:[#allocation3] sm:$0xff]
    %v190 = vld [vmem:[#allocation3 + $0x8] sm:$0xff]
    %v191 = vld [vmem:[#allocation3 + $0x10] sm:$0xff]
    %v192 = vld [vmem:[#allocation3 + $0x18] sm:$0xff]
    %v193 = vld [vmem:[#allocation3 + $0x20] sm:$0xff]
    %v194 = vld [vmem:[#allocation3 + $0x28] sm:$0xff]
    %v195 = vld [vmem:[#allocation3 + $0x30] sm:$0xff]
    %v196 = vld [vmem:[#allocation3 + $0x38] sm:$0xff]
    %v197 = vld [vmem:[#allocation3 + $0x40] sm:$0xff]
    %v198 = vld [vmem:[#allocation3 + $0x48] sm:$0xff]
    %v199 = vld [vmem:[#allocation3 + $0x50] sm:$0xff]
    %v200 = vld [vmem:[#allocation3 + $0x58] sm:$0xff]
    %v201 = vld [vmem:[#allocation3 + $0x60] sm:$0xff]
    %v202 = vld [vmem:[#allocation3 + $0x68] sm:$0xff]
    %v203 = vld [vmem:[#allocation3 + $0x70] sm:$0xff]
    %v204 = vld [vmem:[#allocation3 + $0x78] sm:$0xff]
    %v205 = vld [vmem:[#allocation3 + $0x80] sm:$0xff]
    %v206 = vld [vmem:[#allocation3 + $0x88] sm:$0xff]
    %v207 = vld [vmem:[#allocation3 + $0x90] sm:$0xff]
    %v208 = vld [vmem:[#allocation3 + $0x98] sm:$0xff]
    %v209 = vld [vmem:[#allocation3 + $0xa0] sm:$0xff]
    %v210 = vld [vmem:[#allocation3 + $0xa8] sm:$0xff]
    %v211 = vld [vmem:[#allocation3 + $0xb0] sm:$0xff]
    %v212 = vld [vmem:[#allocation3 + $0xb8] sm:$0xff]
    %v213 = vld [vmem:[#allocation3 + $0xc0] sm:$0xff]
    %v214 = vld [vmem:[#allocation3 + $0xc8] sm:$0xff]
    %v215 = vld [vmem:[#allocation3 + $0xd0] sm:$0xff]
    %v216 = vld [vmem:[#allocation3 + $0xd8] sm:$0xff]
    %v217 = vld [vmem:[#allocation3 + $0xe0] sm:$0xff]
    %v218 = vld [vmem:[#allocation3 + $0xe8] sm:$0xff]
    %v219 = vld [vmem:[#allocation3 + $0xf0] sm:$0xff]
    %v220 = vld [vmem:[#allocation3 + $0xf8] sm:$0xff]
    %v221 = vld [vmem:[#allocation3 + $0x100] sm:$0xff]
    %v222 = vld [vmem:[#allocation3 + $0x108] sm:$0xff]
    %v223 = vld [vmem:[#allocation3 + $0x110] sm:$0xff]
    %v224 = vld [vmem:[#allocation3 + $0x118] sm:$0xff]
    %v225 = vld [vmem:[#allocation3 + $0x120] sm:$0xff]
    %v226 = vld [vmem:[#allocation3 + $0x128] sm:$0xff]
    %v227 = vld [vmem:[#allocation3 + $0x130] sm:$0xff]
    %v228 = vld [vmem:[#allocation3 + $0x138] sm:$0xff]
    %v229 = vld [vmem:[#allocation3 + $0x140] sm:$0xff]
    %v230 = vld [vmem:[#allocation3 + $0x148] sm:$0xff]
    %v231 = vld [vmem:[#allocation3 + $0x150] sm:$0xff]
    %v232 = vld [vmem:[#allocation3 + $0x158] sm:$0xff]
    %v233 = vld [vmem:[#allocation3 + $0x160] sm:$0xf]
    %v234 = vld [vmem:[#allocation3 + $0x168] sm:$0xf]
    %v235 = vld [vmem:[%s5] sm:$0x3]
    %v237 = vlaneseq
    %v238 = vshrl.u32 %v237, 7
    %v239 = vsub.s32 0, %v238
    %v240 = vrot.slane %v235, %v239
    %v241 = vlaneseq
    %v242 = vshrl.u32 %v241, 7
    %v243 = vsub.s32 1, %v242
    %v244 = vrot.slane %v235, %v243
    %vm247 = vcmask 424960
    %v249 = vsel %vm247, %v188, 0
    %vm251 = vcmask 1043456
    %v253 = vsel %vm251, %v233, 0
    %v256 = vsel %vm251, %v234, 0
    %258 = vmatprep.subr.mxu0 %v190
    %259 = vmatpush1.msra.mxu0 %v189
    %260 = vmatprep.subr.mxu0 %v192
    %261 = vmatpush1.msra.mxu0 %v191
    %262 = vmatprep.subr.mxu0 %v194
    %263 = vmatpush1.msra.mxu0 %v193
    %264 = vmatprep.subr.mxu0 %v196
    %265 = vmatpush1.msra.mxu0 %v195
    %266 = vmatprep.subr.mxu0 %v198
    %267 = vmatpush1.msra.mxu0 %v197
    %268 = vmatprep.subr.mxu0 %v200
    %269 = vmatpush1.msra.mxu0 %v199
    %270 = vmatprep.subr.mxu0 %v202
    %271 = vmatpush1.msra.mxu0 %v201
    %272 = vmatprep.subr.mxu0 %v204
    %273 = vmatpush1.msra.mxu0 %v203
    %274 = vmatprep.subr.mxu0 %v206
    %275 = vmatpush1.msra.mxu0 %v205
    %276 = vmatprep.subr.mxu0 %v208
    %277 = vmatpush1.msra.mxu0 %v207
    %278 = vmatprep.subr.mxu0 %v210
    %279 = vmatpush1.msra.mxu0 %v209
    %280 = vmatprep.subr.mxu0 %v212
    %281 = vmatpush1.msra.mxu0 %v211
    %282 = vmatprep.subr.mxu0 %v214
    %283 = vmatpush1.msra.mxu0 %v213
    %284 = vmatprep.subr.mxu0 %v216
    %285 = vmatpush1.msra.mxu0 %v215
    %286 = vmatprep.subr.mxu0 %v218
    %287 = vmatpush1.msra.mxu0 %v217
    %288 = vmatprep.subr.mxu0 %v220
    %289 = vmatpush1.msra.mxu0 %v219
    %290 = vmatprep.subr.mxu0 %v222
    %291 = vmatpush1.msra.mxu0 %v221
    %292 = vmatprep.subr.mxu0 %v224
    %293 = vmatpush1.msra.mxu0 %v223
    %294 = vmatprep.subr.mxu0 %v226
    %295 = vmatpush1.msra.mxu0 %v225
    %296 = vmatprep.subr.mxu0 %v228
    %297 = vmatpush1.msra.mxu0 %v227
    %298 = vmatprep.subr.mxu0 %v230
    %299 = vmatpush1.msra.mxu0 %v229
    %300 = vmatprep.subr.mxu0 %v232
    %301 = vmatpush1.msra.mxu0 %v231
    %302 = vmatprep.subr.mxu0 %v256
    %303 = vmatpush1.msra.mxu0 %v253
    %304 = vmatprep.subr.mxu0 0.0
    %305 = vmatpush1.msra.mxu0 0.0
    %306 = vmatprep.subr.mxu0 0.0
    %307 = vmatpush1.msra.mxu0 0.0
    %308 = vmatprep.subr.mxu0 0.0
    %309 = vmatpush1.msra.mxu0 0.0
    %310 = vmatprep.subr.mxu0 0.0
    %311 = vmatpush1.msra.mxu0 0.0
    %312 = vmatprep.subr.mxu0 0.0
    %313 = vmatpush1.msra.mxu0 0.0
    %314 = vmatprep.subr.mxu0 0.0
    %315 = vmatpush1.msra.mxu0 0.0
    %316 = vmatprep.subr.mxu0 0.0
    %317 = vmatpush1.msra.mxu0 0.0
    %318 = vmatprep.subr.mxu0 0.0
    %319 = vmatpush1.msra.mxu0 0.0
    %320 = vmatprep.subr.mxu0 0.0
    %321 = vmatpush1.msra.mxu0 0.0
    %322 = vmatprep.mubr.f32.mxu0 %v249
    %323 = vmatmul.mubr.f32.gmra.mrb[0].mxu0 %v186
    %v324 = vpop.f32.mrb[0].mxu0
    %v325 = vadd.f32 %v240, %v324
    %v326 = vpop.f32.mrb[0].mxu0
    %v327 = vadd.f32 %v244, %v326
    %328 = vdwg.mxu0
    %329 = vst [vmem:[%s11] sm:$0xff] %v325
    %330 = vst.msk [vmem:[%s11 + $0x8] sm:$0xff] %vm247, %v327
    %v331 = vld [vmem:[%s6] sm:$0x3]
    %v333 = vlaneseq
    %v334 = vshrl.u32 %v333, 7
    %v335 = vsub.s32 0, %v334
    %v336 = vrot.slane %v331, %v335
    %v337 = vlaneseq
    %v338 = vshrl.u32 %v337, 7
    %v339 = vsub.s32 1, %v338
    %v340 = vrot.slane %v331, %v339
    %v343 = vsub.f32 %v325, %v336
    %v344 = vsub.f32 %v327, %v340
    %v345 = vmul.f32 %v343, %v343
    %v346 = vmul.f32 %v344, %v344
    %v347 = vsel %vm247, %v346, 0.0
    %v348 = vadd.f32 %v345, %v347
    %349 = vadd.xlane.f32.xlu0 %v348
    %v350 = vpop.xlane.xlu0 %349
    %v351 = vsub.f32 0.0, %v350
    %v352 = vld [vmem:[#allocation2] sm:$0x1]
    %v354 = vlaneseq
    %v355 = vshrl.u32 %v354, 7
    %v356 = vsub.s32 0, %v355
    %v357 = vrot.slane %v352, %v356
    %v359 = vmul.f32 %v351, %v357
    %v360 = vmul.f32 %v359, 1.442695
    %v361 = vpow.pop %v360
    %v362 = vld [vmem:[%s8] sm:$0x1]
    %364 = vset.pattern.permute.xlu0 0
    %365 = vperm.xlu0 %364, %v361
    %v366 = vpop.permute.xlu0 %365
    %v369 = vlaneseq
    %v370 = vshrl.u32 %v369, 7
    %v371 = vsub.s32 0, %v370
    %v372 = vrot.slane %v362, %v371
    %v374 = vmul.f32 %v366, %v372
    %v375 = vld [vmem:[#allocation5] sm:$0x1]
    %v377 = vlaneseq
    %v378 = vshrl.u32 %v377, 7
    %v379 = vsub.s32 0, %v378
    %v380 = vrot.slane %v375, %v379
    %v382 = vadd.f32 %v374, %v380
    %vm383 = vcmask 15360
    %384 = vst.msk [vmem:[%s10] sm:$0xff] %vm383, %v382
    // Predicated region
    $region50: #{rbfnn_forward.1} parent=1 // pred_check
      _
    $region51: #{rbfnn_forward.1} parent=1 // pred_check_branch
      %386 = sbr.rel (0) target = $region53
    $region52: #{rbfnn_forward.1} parent=1 // pred_region
      _
    $region53: #{rbfnn_forward.1} parent=1 // pred_fallthru
      _
    // Predicated region
    $region54: #{rbfnn_forward.1} parent=1 // pred_check
      _
    $region55: #{rbfnn_forward.1} parent=1 // pred_check_branch
      %388 = sbr.rel (0) target = $region57
    $region56: #{rbfnn_forward.1} parent=1 // pred_region
      _
    $region57: #{rbfnn_forward.1} parent=1 // pred_fallthru
      _
    // Predicated region
    $region58: #{rbfnn_forward.1} parent=1 // pred_check
      _
    $region59: #{rbfnn_forward.1} parent=1 // pred_check_branch
      %390 = sbr.rel (0) target = $region61
    $region60: #{rbfnn_forward.1} parent=1 // pred_region
      _
    $region61: #{rbfnn_forward.1} parent=1 // pred_fallthru
      _
    // Predicated region
    $region62: #{rbfnn_forward.1} parent=1 // pred_check
      _
    $region63: #{rbfnn_forward.1} parent=1 // pred_check_branch
      %392 = sbr.rel (0) target = $region65
    $region64: #{rbfnn_forward.1} parent=1 // pred_region
      _
    $region65: #{rbfnn_forward.1} parent=1 // pred_fallthru
      _
    %393 = vsyncpa [#allocation4], 1
    %394 = vsyncpa [#allocation6], 1

</llo_original>
